<compile_context>
chip_gen: v7x
topology: tpu7x:2x2x1
jax: 0.10.0
libtpu: 0.0.40
codegen_flags: <defaults>
</compile_context>

<pallas_src>
import functools

import jax
import jax.numpy as jnp
from jax import lax
from jax.experimental import pallas as pl
from jax.experimental.pallas import tpu as pltpu

EPS = 1e-8  # torch F.cosine_similarity default eps


def linear_norm_kernel(h_ref, w_ref, b_ref, wh_ref, whn_ref, whv_ref):
    # Wh = h @ W^T + bias (MXU, f32 accumulation).
    wh = jnp.dot(h_ref[...], w_ref[...], preferred_element_type=jnp.float32)
    wh = wh + b_ref[...]                                   # [TM, Fp]
    wh_ref[...] = wh                                       # f32 (skip path)
    whv_ref[...] = wh.astype(whv_ref.dtype)                # compute-dtype values
    # Row-normalized copy for cosine similarity:
    # 1/max(||wh||, EPS) == rsqrt(max(sumsq, EPS^2)); rsqrt goes to the EUP slot.
    sumsq = jnp.sum(wh * wh, axis=-1, keepdims=True)       # [TM, 1]
    inv = lax.rsqrt(jnp.maximum(sumsq, EPS * EPS))
    whn_ref[...] = (wh * inv).astype(whn_ref.dtype)


def att_prop_kernel(params_ref, adj_ref, deg_ref, whn_q_ref, whn_k_ref,
                    whv_ref, wh_ref, out_ref, acc_ref, *, tm, tn, compute_dtype):
    i = pl.program_id(0)    # row-tile index   ("parallel")
    kn = pl.program_id(1)   # column-tile index ("arbitrary" reduction)

    @pl.when(kn == 0)
    def _():
        acc_ref[...] = jnp.zeros_like(acc_ref)

    deg_a = params_ref[0]
    deg_b = params_ref[1]
    c0s = params_ref[2]     # scale * softmax(coeff)[0]
    c1s = params_ref[3]     # scale * softmax(coeff)[1]

    # Cosine similarity of this row tile vs this column tile (inputs are
    # pre-normalized). dot_general contracting the last axes avoids a transpose;
    # bf16 operands, f32 accumulation.
    sim = lax.dot_general(whn_q_ref[...], whn_k_ref[...],
                          (((1,), (1,)), ((), ())),
                          preferred_element_type=jnp.float32)          # [TM, TN]

    # non_linear_degree: softplus(a*deg + b) on edge values; off-edge entries
    # are killed by the adjacency factor below (matches the sparse product).
    sc = jnp.logaddexp(deg_a * deg_ref[...].astype(jnp.float32) + deg_b, 0.0)

    # Diagonal removal (adj_remove_diag) done in-kernel: global row == col.
    rows = i * tm + lax.broadcasted_iota(jnp.int32, (tm, tn), 0)
    cols = kn * tn + lax.broadcasted_iota(jnp.int32, (tm, tn), 1)

    # Fused signed attention:
    #   c0*relu(sim) + c1*(-relu(-sim)) == where(sim>0, c0, c1) * sim
    att = adj_ref[...].astype(jnp.float32) * sc \
        * jnp.where(sim > 0.0, c0s, c1s) * sim                          # [TM, TN]
    att = jnp.where(rows != cols, att, 0.0)

    # Single propagation matmul, accumulated over column tiles (f32 acc).
    acc_ref[...] += jnp.dot(att.astype(compute_dtype), whv_ref[...],
                            preferred_element_type=jnp.float32)         # [TM, Fp]

    @pl.when(kn == pl.num_programs(1) - 1)
    def _():
        c2s = params_ref[4]  # scale * softmax(coeff)[2]
        out_ref[...] = acc_ref[...] + c2s * wh_ref[...]


def _default_row_tile():
    # v6e's MXU is 256-wide in M; v5e is 128x128; keep 128 on v7x (VMEM budget).
    try:
        kind = jax.devices()[0].device_kind.lower()
    except Exception:
        return 128
    return 256 if "v6" in kind else 128


def _largest_col_tile(n_pad, col_tile):
    # Largest multiple of 128 that divides n_pad and is <= col_tile.
    base = n_pad // 128
    kmax = max(1, min(base, col_tile // 128))
    best = 1
    for k in range(1, kmax + 1):
        if base % k == 0:
            best = k
    return 128 * best


def ggcn_sp_forward(h, adj, deg, w_t, b, deg_coeff, coeff, scale_param,
                    compute_dtype=jnp.bfloat16, row_tile=None, col_tile=512):
    n, f_in = h.shape
    f_out = w_t.shape[1]
    compute_dtype = jnp.dtype(compute_dtype)
    is_f32 = compute_dtype == jnp.dtype(jnp.float32)

    if row_tile is None:
        row_tile = _default_row_tile()

    # Pad output-feature dim to a lane-dense multiple of 128. Zero-padded W/b
    # columns give zero Wh columns -> neutral for cosine sim and propagation;
    # the padded output columns are sliced off at the end.
    f_pad = 128 * pl.cdiv(f_out, 128)
    w_p = jnp.zeros((f_in, f_pad), jnp.float32).at[:, :f_out].set(
        w_t.astype(jnp.float32))
    b_p = jnp.zeros((1, f_pad), jnp.float32).at[0, :f_out].set(
        b.astype(jnp.float32))

    # Row tile; keep >=2 row tiles where possible (megacore / v7x two TCs).
    tm = row_tile
    if tm > 128 and n > 128 and pl.cdiv(n, tm) < 2:
        tm = 128
    n_pad = tm * pl.cdiv(n, tm)
    tn = _largest_col_tile(n_pad, col_tile)

    # Narrow the O(N^2) HBM streams: adjacency is a 0/1 edge mask
    # (to_dense_adj) -> int8; degree -> compute dtype (bf16 by default).
    # In real use these casts would be cached per graph, like the module's
    # precompute_adj_wo_diag, not redone every forward.
    deg_dtype = jnp.float32 if is_f32 else compute_dtype
    if n_pad != n:
        # Zero padding is exactly neutral: padded adjacency entries are 0.
        h_p = jnp.zeros((n_pad, f_in), h.dtype).at[:n, :].set(h)
        adj_c = jnp.zeros((n_pad, n_pad), jnp.int8).at[:n, :n].set(
            adj.astype(jnp.int8))
        deg_c = jnp.zeros((n_pad, n_pad), deg_dtype).at[:n, :n].set(
            deg.astype(deg_dtype))
    else:
        h_p = h
        adj_c = adj.astype(jnp.int8)
        deg_c = deg.astype(deg_dtype)

    grid_rows = n_pad // tm
    grid_cols = n_pad // tn

    # Tiny parameter nonlinearities on the host; fold softplus(scale) into the
    # softmaxed coefficients so the kernel epilogue is a single FMA.
    coeff_sm = jax.nn.softmax(coeff)
    scale_sp = jax.nn.softplus(scale_param)[0]
    c = scale_sp * coeff_sm
    params = jnp.array([deg_coeff[0], deg_coeff[1], c[0], c[1], c[2],
                        0.0, 0.0, 0.0], dtype=jnp.float32)

    # Kernel 1: linear + row normalization, tiled over rows.
    wh, whn, whv = pl.pallas_call(
        linear_norm_kernel,
        out_shape=(jax.ShapeDtypeStruct((n_pad, f_pad), jnp.float32),
                   jax.ShapeDtypeStruct((n_pad, f_pad), compute_dtype),
                   jax.ShapeDtypeStruct((n_pad, f_pad), compute_dtype)),
        grid=(grid_rows,),
        in_specs=[
            pl.BlockSpec((tm, f_in), lambda i: (i, 0)),      # h row tile
            pl.BlockSpec((f_in, f_pad), lambda i: (0, 0)),   # W^T (full, constant)
            pl.BlockSpec((1, f_pad), lambda i: (0, 0)),      # bias (full, constant)
        ],
        out_specs=(pl.BlockSpec((tm, f_pad), lambda i: (i, 0)),
                   pl.BlockSpec((tm, f_pad), lambda i: (i, 0)),
                   pl.BlockSpec((tm, f_pad), lambda i: (i, 0))),
        compiler_params=pltpu.CompilerParams(
            dimension_semantics=("parallel",)),
    )(h_p, w_p, b_p)

    # Explicit VMEM budget for kernel 2 (double-buffered tiles + accumulator),
    # clamped to the smallest physical VMEM across generations (v7x: 64 MiB).
    csz = compute_dtype.itemsize
    dsz = jnp.dtype(deg_dtype).itemsize
    footprint = (2 * (tm * tn * (1 + dsz)                 # adj + deg tiles
                      + (tm + 2 * tn) * f_pad * csz       # whn_q + whn_k + whv
                      + 2 * tm * f_pad * 4)               # wh skip tile + output
                 + tm * f_pad * 4)                        # accumulator scratch
    vmem_limit = int(min(64 * 1024 * 1024,
                         max(32 * 1024 * 1024, 2 * footprint)))

    # Kernel 2: fused attention + accumulated propagation matmul.
    out_padded = pl.pallas_call(
        functools.partial(att_prop_kernel, tm=tm, tn=tn,
                          compute_dtype=compute_dtype),
        out_shape=jax.ShapeDtypeStruct((n_pad, f_pad), jnp.float32),
        grid=(grid_rows, grid_cols),
        in_specs=[
            pl.BlockSpec(memory_space=pltpu.MemorySpace.SMEM),  # scalar params
            pl.BlockSpec((tm, tn), lambda i, k: (i, k)),        # adj tile (int8)
            pl.BlockSpec((tm, tn), lambda i, k: (i, k)),        # degree tile
            pl.BlockSpec((tm, f_pad), lambda i, k: (i, 0)),     # normalized Wh (queries)
            pl.BlockSpec((tn, f_pad), lambda i, k: (k, 0)),     # normalized Wh (keys)
            pl.BlockSpec((tn, f_pad), lambda i, k: (k, 0)),     # Wh values (compute dtype)
            pl.BlockSpec((tm, f_pad), lambda i, k: (i, 0)),     # Wh f32 (skip path)
        ],
        out_specs=pl.BlockSpec((tm, f_pad), lambda i, k: (i, 0)),
        scratch_shapes=[pltpu.VMEM((tm, f_pad), jnp.float32)],
        compiler_params=pltpu.CompilerParams(
            dimension_semantics=("parallel", "arbitrary"),
            vmem_limit_bytes=vmem_limit),
    )(params, adj_c, deg_c, whn, whn, whv, wh)

    return out_padded[:n, :f_out]


def reference_forward(h, adj, deg, w_t, b, deg_coeff, coeff, scale_param):
    """Pure-JAX dense reference of GGCNlayer_SP.forward (f32 ground truth)."""
    wh = h @ w_t + b
    norm = jnp.maximum(jnp.linalg.norm(wh, axis=-1, keepdims=True), EPS)
    sim = (wh @ wh.T) / (norm * norm.T)
    e_pos = jnp.maximum(sim, 0.0)
    e_neg = jnp.minimum(sim, 0.0)
    n = adj.shape[0]
    adj_nd = adj * (1.0 - jnp.eye(n, dtype=adj.dtype))
    sc = jax.nn.softplus(deg_coeff[0] * deg + deg_coeff[1])
    att_pos = adj_nd * sc * e_pos
    att_neg = adj_nd * sc * e_neg
    prop_pos = att_pos @ wh
    prop_neg = att_neg @ wh
    c = jax.nn.softmax(coeff)
    s = jax.nn.softplus(scale_param)[0]
    return s * (c[0] * prop_pos + c[1] * prop_neg + c[2] * wh)


if __name__ == "__main__":
    key = jax.random.PRNGKey(0)
    k_h, k_w, k_b, k_adj = jax.random.split(key, 4)

    N = 256        # number of graph nodes (2 row tiles of 128)
    F_IN = 32      # in_features
    F_OUT = 32     # out_features

    # node features
    h = jax.random.normal(k_h, (N, F_IN), dtype=jnp.float32)

    # deterministic random symmetric 0/1 adjacency (to_dense_adj equivalent)
    rand = jax.random.uniform(k_adj, (N, N), dtype=jnp.float32)
    adj = (rand < 0.05).astype(jnp.float32)
    adj = jnp.maximum(adj, adj.T)

    # synthetic degree_precompute: sqrt(deg_j / deg_i) on edges, 0 off edges
    d = jnp.maximum(adj.sum(axis=1), 1.0)
    deg = adj * jnp.sqrt(d[None, :] / d[:, None])

    # nn.Linear(F_IN, F_OUT) params, deterministic init
    bound = 1.0 / jnp.sqrt(F_IN)
    w = jax.random.uniform(k_w, (F_OUT, F_IN), minval=-bound, maxval=bound,
                           dtype=jnp.float32)
    b = jax.random.uniform(k_b, (F_OUT,), minval=-bound, maxval=bound,
                           dtype=jnp.float32)
    w_t = w.T  # pass pre-transposed: [F_IN, F_OUT]

    # module parameters (use_decay=True defaults)
    deg_coeff = jnp.array([0.5, 0.0], dtype=jnp.float32)
    coeff = jnp.zeros((3,), dtype=jnp.float32)
    scale_param = 2.0 * jnp.ones((1,), dtype=jnp.float32)

    ref = reference_forward(h, adj, deg, w_t, b, deg_coeff, coeff, scale_param)

    # f32 path: tight numerical check
    out_f32 = ggcn_sp_forward(h, adj, deg, w_t, b, deg_coeff, coeff,
                              scale_param, compute_dtype=jnp.float32)
    out_f32 = jax.block_until_ready(out_f32)
    assert out_f32.shape == (N, F_OUT)
    assert jnp.max(jnp.abs(out_f32 - ref)) < 1e-3, "f32 mismatch vs reference"

    # default bf16 path (MXU-native on all generations): looser check
    out_bf16 = ggcn_sp_forward(h, adj, deg, w_t, b, deg_coeff, coeff,
                               scale_param)
    out_bf16 = jax.block_until_ready(out_bf16)
    assert out_bf16.shape == (N, F_OUT)
    assert jnp.max(jnp.abs(out_bf16 - ref)) < 5e-2, "bf16 mismatch vs reference"

    print("KERNEL_OK")
</pallas_src>

<mosaic_0001>
module attributes {stable_mosaic.version = 11 : i64} {
  func.func @linear_norm_kernel(%arg0: i32, %arg1: memref<128x32xf32, #tpu.memory_space<vmem>>, %arg2: memref<32x128xf32, #tpu.memory_space<vmem>>, %arg3: memref<1x128xf32, #tpu.memory_space<vmem>>, %arg4: memref<128x128xf32, #tpu.memory_space<vmem>>, %arg5: memref<128x128xf32, #tpu.memory_space<vmem>>, %arg6: memref<128x128xf32, #tpu.memory_space<vmem>>) attributes {dimension_semantics = [#tpu.dimension_semantics<parallel>], iteration_bounds = array<i64: 2>, scalar_prefetch = 0 : i64, scratch_operands = 0 : i64, tpu.core_type = #tpu.core_type<tc>, window_params = [{transform_indices = @transform_0, window_bounds = array<i64: 128, 32>}, {pipeline_mode = #tpu.pipeline_mode<synchronous>, transform_indices = @transform_1, window_bounds = array<i64: 32, 128>}, {pipeline_mode = #tpu.pipeline_mode<synchronous>, transform_indices = @transform_2, window_bounds = array<i64: 1, 128>}, {transform_indices = @transform_3, window_bounds = array<i64: 128, 128>}, {transform_indices = @transform_4, window_bounds = array<i64: 128, 128>}, {transform_indices = @transform_5, window_bounds = array<i64: 128, 128>}]} {
    %c0 = arith.constant 0 : index
    %c0_0 = arith.constant 0 : index
    %0 = vector.load %arg1[%c0, %c0_0] : memref<128x32xf32, #tpu.memory_space<vmem>>, vector<128x32xf32>
    %c0_1 = arith.constant 0 : index
    %c0_2 = arith.constant 0 : index
    %1 = vector.load %arg2[%c0_1, %c0_2] : memref<32x128xf32, #tpu.memory_space<vmem>>, vector<32x128xf32>
    %cst = arith.constant dense<0.000000e+00> : vector<128x128xf32>
    %2 = tpu.matmul %0, %1, %cst {dimension_numbers = #tpu.dot_dimension_numbers<[1], [0], [0], [1], [0, 0, 1, 1], [], []>} : vector<128x32xf32>, vector<32x128xf32>, vector<128x128xf32> -> vector<128x128xf32>
    %c0_3 = arith.constant 0 : index
    %c0_4 = arith.constant 0 : index
    %3 = vector.load %arg3[%c0_3, %c0_4] : memref<1x128xf32, #tpu.memory_space<vmem>>, vector<1x128xf32>
    %4 = vector.broadcast %3 : vector<1x128xf32> to vector<128x128xf32>
    %5 = arith.addf %2, %4 : vector<128x128xf32>
    %c0_5 = arith.constant 0 : index
    %c0_6 = arith.constant 0 : index
    %6 = vector.load %arg4[%c0_5, %c0_6] : memref<128x128xf32, #tpu.memory_space<vmem>>, vector<128x128xf32>
    tpu.vector_store %arg4[%c0_5, %c0_6], %5 {strides = array<i32>} : memref<128x128xf32, #tpu.memory_space<vmem>>, vector<128x128xf32>,
    %c0_7 = arith.constant 0 : index
    %c0_8 = arith.constant 0 : index
    %7 = vector.load %arg6[%c0_7, %c0_8] : memref<128x128xf32, #tpu.memory_space<vmem>>, vector<128x128xf32>
    tpu.vector_store %arg6[%c0_7, %c0_8], %5 {strides = array<i32>} : memref<128x128xf32, #tpu.memory_space<vmem>>, vector<128x128xf32>,
    %8 = arith.mulf %5, %5 : vector<128x128xf32>
    %cst_9 = arith.constant dense<0.000000e+00> : vector<128xf32>
    %9 = vector.multi_reduction <add>, %8, %cst_9 [1] : vector<128x128xf32> to vector<128xf32>
    %10 = vector.shape_cast %9 : vector<128xf32> to vector<128x1xf32>
    %cst_10 = arith.constant 1.000000e-16 : f32
    %11 = vector.broadcast %cst_10 : f32 to vector<128x1xf32>
    %12 = arith.maximumf %10, %11 : vector<128x1xf32>
    %13 = math.rsqrt %12 : vector<128x1xf32>
    %14 = vector.broadcast %13 : vector<128x1xf32> to vector<128x128xf32>
    %15 = arith.mulf %5, %14 : vector<128x128xf32>
    %c0_11 = arith.constant 0 : index
    %c0_12 = arith.constant 0 : index
    %16 = vector.load %arg5[%c0_11, %c0_12] : memref<128x128xf32, #tpu.memory_space<vmem>>, vector<128x128xf32>
    tpu.vector_store %arg5[%c0_11, %c0_12], %15 {strides = array<i32>} : memref<128x128xf32, #tpu.memory_space<vmem>>, vector<128x128xf32>,
    return
  }
  func.func @transform_0(%arg0: i32) -> (i32, i32) {
    %c0_i32 = arith.constant 0 : i32
    %c0_i32_0 = arith.constant 0 : i32
    return %arg0, %c0_i32 : i32, i32
  }
  func.func @transform_1(%arg0: i32) -> (i32, i32) {
    %c0_i32 = arith.constant 0 : i32
    %c0_i32_0 = arith.constant 0 : i32
    %c0_i32_1 = arith.constant 0 : i32
    return %c0_i32, %c0_i32_0 : i32, i32
  }
  func.func @transform_2(%arg0: i32) -> (i32, i32) {
    %c0_i32 = arith.constant 0 : i32
    %c0_i32_0 = arith.constant 0 : i32
    %c0_i32_1 = arith.constant 0 : i32
    return %c0_i32, %c0_i32_0 : i32, i32
  }
  func.func @transform_3(%arg0: i32) -> (i32, i32) {
    %c0_i32 = arith.constant 0 : i32
    %c0_i32_0 = arith.constant 0 : i32
    return %arg0, %c0_i32 : i32, i32
  }
  func.func @transform_4(%arg0: i32) -> (i32, i32) {
    %c0_i32 = arith.constant 0 : i32
    %c0_i32_0 = arith.constant 0 : i32
    return %arg0, %c0_i32 : i32, i32
  }
  func.func @transform_5(%arg0: i32) -> (i32, i32) {
    %c0_i32 = arith.constant 0 : i32
    %c0_i32_0 = arith.constant 0 : i32
    return %arg0, %c0_i32 : i32, i32
  }
}

</mosaic_0001>

<llo_original>
// kernel: tpu_custom_call.1
$region0: #{tpu_custom_call.1}
  #allocation0 [shape = 'u32[]', space=smem, size = 0x4, offset = 0x4, fixed_abs, tag = 'smem constant byte address 0x4 - core index']
  #allocation1 [shape = 'u32[144,128]{1,0:T(1,128)}', space=vmem, size = 0x12000, scoped, tag = 'internal scratch']
  %s0 = inlined_call_operand.vmem [shape: f32[256,32], index: 0, kind: input, shape index: {}]
  %s1 = inlined_call_operand.vmem [shape: f32[32,128], index: 1, kind: input, shape index: {}]
  %s2 = inlined_call_operand.vmem [shape: f32[1,128], index: 2, kind: input, shape index: {}]
  %s3 = inlined_call_operand.hbm [shape: f32[256,128], index: 3, kind: output, shape index: {0}]
  %s4 = inlined_call_operand.hbm [shape: f32[256,128], index: 4, kind: output, shape index: {1}]
  %s5 = inlined_call_operand.hbm [shape: f32[256,128], index: 5, kind: output, shape index: {2}]
  %6 = xla_tuple %s3, %s4, %s5
  %s7 = sld [smem:[#allocation0]]
  $region61: #{tpu_custom_call.1} parent=0
    _
  %s9 = ssub.s32 1, %s7
  %s10 = scalar_select 0, %s9, %s7
  $region1: #{tpu_custom_call.1} parent=0
    #allocation2 [shape = 'u8[131072]{0}', space=vmem, size = 0x20000, scoped, tag = 'output window, operand 0']
    #allocation3 [shape = 's32[2]{0}', space=sflag, size = 0x8, scoped, tag = 'scoped memory for tpu_custom_call.1']
    #allocation4 [shape = 'u8[131072]{0}', space=vmem, size = 0x20000, scoped, tag = 'output window, operand 1']
    #allocation5 [shape = 's32[2]{0}', space=sflag, size = 0x8, scoped, tag = 'scoped memory for tpu_custom_call.1']
    #allocation6 [shape = 'u8[131072]{0}', space=vmem, size = 0x20000, scoped, tag = 'output window, operand 2']
    %11 = vsyncpa [#allocation3], 0
    %s12 = scalar_lea.sflag [#allocation3], 1
    %13 = vsyncpa %s12, 0
    %14 = vsyncpa [#allocation5], 0
    %s15 = scalar_lea.sflag [#allocation5], 1
    %16 = vsyncpa %s15, 0
    loop: start=0, step=1, limit=4
    $region2: #{tpu_custom_call.1} parent=1 // loop_pre_header
      _
    $region3: #{tpu_custom_call.1} parent=1 // loop_header
      %s18 = sphi 0, %s22
      %p19 = scmp.ge.s32.totalorder %s18, 4
      %s28 = sphi 0, %s30
      %s31 = sphi 0, %s28
      %s32 = sphi 0, %s31
      %s48 = sphi 0, %s32
      %s52 = sphi 0, %s52
      %s54 = sphi 0, %s52
      %s55 = sphi 0, %s54
      %s69 = sphi 0, %s55
      %s73 = sphi 0, %s73
      %s75 = sphi 0, %s73
      %s76 = sphi 0, %s75
      %s90 = sphi 0, %s76
      %s96 = sphi 0, %s98
      %s99 = sphi 0, %s96
      %s100 = sphi 0, %s99
      %s116 = sphi 0, %s100
      %s122 = sphi 0, %s124
      %s125 = sphi 0, %s122
      %s126 = sphi 0, %s125
      %s142 = sphi 0, %s126
      %s148 = sphi 0, %s150
      %s151 = sphi 0, %s148
      %s152 = sphi 0, %s151
      %s168 = sphi 0, %s152
    $region4: #{tpu_custom_call.1} parent=1 // loop_header_branch
      %21 = sbr.rel (%p19) target = $region8
    $region5: #{tpu_custom_call.1} parent=1 // loop_body
      %s23 = ssub.s32 %s18, 1
      %s24 = ssub.s32 %s18, 2
      %s25 = sadd.s32 %s18, 1
      %s26 = ssub.s32 %s18, %s25
      %p27 = scmp.eq.s32.totalorder %s26, 0
      %s29 = sadd.s32 %s28, 1
      %s30 = scalar_select %p27, %s28, %s29
      %p33 = pneg %p27
      %p34 = scmp.eq.s32.totalorder %s18, 1
      %p35 = por %p33, %p34
      %p36 = scmp.ne.s32.totalorder %s28, %s31
      %p37 = scmp.eq.s32.totalorder %s18, 0
      %p38 = por %p36, %p37
      %p39 = scmp.ne.s32.totalorder %s28, %s31
      %p40 = scmp.eq.s32.totalorder %s23, 1
      %p41 = por %p39, %p40
      %p42 = scmp.ne.s32.totalorder %s31, %s32
      %p43 = scmp.eq.s32.totalorder %s23, 0
      %p44 = por %p42, %p43
      %p45 = scmp.ne.s32.totalorder %s31, %s32
      %p46 = scmp.eq.s32.totalorder %s24, 1
      %p47 = por %p45, %p46
      %p49 = scmp.ne.s32.totalorder %s32, %s48
      %p50 = scmp.eq.s32.totalorder %s24, 0
      %p51 = por %p49, %p50
      %s53 = sadd.s32 %s52, 1
      %p56 = scmp.eq.s32.totalorder %s18, 1
      %p57 = scmp.ne.s32.totalorder %s52, %s54
      %p58 = scmp.eq.s32.totalorder %s18, 0
      %p59 = por %p57, %p58
      %p60 = scmp.ne.s32.totalorder %s52, %s54
      %p61 = scmp.eq.s32.totalorder %s23, 1
      %p62 = por %p60, %p61
      %p63 = scmp.ne.s32.totalorder %s54, %s55
      %p64 = scmp.eq.s32.totalorder %s23, 0
      %p65 = por %p63, %p64
      %p66 = scmp.ne.s32.totalorder %s54, %s55
      %p67 = scmp.eq.s32.totalorder %s24, 1
      %p68 = por %p66, %p67
      %p70 = scmp.ne.s32.totalorder %s55, %s69
      %p71 = scmp.eq.s32.totalorder %s24, 0
      %p72 = por %p70, %p71
      %s74 = sadd.s32 %s73, 1
      %p77 = scmp.eq.s32.totalorder %s18, 1
      %p78 = scmp.ne.s32.totalorder %s73, %s75
      %p79 = scmp.eq.s32.totalorder %s18, 0
      %p80 = por %p78, %p79
      %p81 = scmp.ne.s32.totalorder %s73, %s75
      %p82 = scmp.eq.s32.totalorder %s23, 1
      %p83 = por %p81, %p82
      %p84 = scmp.ne.s32.totalorder %s75, %s76
      %p85 = scmp.eq.s32.totalorder %s23, 0
      %p86 = por %p84, %p85
      %p87 = scmp.ne.s32.totalorder %s75, %s76
      %p88 = scmp.eq.s32.totalorder %s24, 1
      %p89 = por %p87, %p88
      %p91 = scmp.ne.s32.totalorder %s76, %s90
      %p92 = scmp.eq.s32.totalorder %s24, 0
      %p93 = por %p91, %p92
      %s94 = ssub.s32 %s18, %s25
      %p95 = scmp.eq.s32.totalorder %s94, 0
      %s97 = sadd.s32 %s96, 1
      %s98 = scalar_select %p95, %s96, %s97
      %p101 = pneg %p95
      %p102 = scmp.eq.s32.totalorder %s18, 1
      %p103 = por %p101, %p102
      %p104 = scmp.ne.s32.totalorder %s96, %s99
      %p105 = scmp.eq.s32.totalorder %s18, 0
      %p106 = por %p104, %p105
      %p107 = scmp.ne.s32.totalorder %s96, %s99
      %p108 = scmp.eq.s32.totalorder %s23, 1
      %p109 = por %p107, %p108
      %p110 = scmp.ne.s32.totalorder %s99, %s100
      %p111 = scmp.eq.s32.totalorder %s23, 0
      %p112 = por %p110, %p111
      %p113 = scmp.ne.s32.totalorder %s99, %s100
      %p114 = scmp.eq.s32.totalorder %s24, 1
      %p115 = por %p113, %p114
      %p117 = scmp.ne.s32.totalorder %s100, %s116
      %p118 = scmp.eq.s32.totalorder %s24, 0
      %p119 = por %p117, %p118
      %s120 = ssub.s32 %s18, %s25
      %p121 = scmp.eq.s32.totalorder %s120, 0
      %s123 = sadd.s32 %s122, 1
      %s124 = scalar_select %p121, %s122, %s123
      %p127 = pneg %p121
      %p128 = scmp.eq.s32.totalorder %s18, 1
      %p129 = por %p127, %p128
      %p130 = scmp.ne.s32.totalorder %s122, %s125
      %p131 = scmp.eq.s32.totalorder %s18, 0
      %p132 = por %p130, %p131
      %p133 = scmp.ne.s32.totalorder %s122, %s125
      %p134 = scmp.eq.s32.totalorder %s23, 1
      %p135 = por %p133, %p134
      %p136 = scmp.ne.s32.totalorder %s125, %s126
      %p137 = scmp.eq.s32.totalorder %s23, 0
      %p138 = por %p136, %p137
      %p139 = scmp.ne.s32.totalorder %s125, %s126
      %p140 = scmp.eq.s32.totalorder %s24, 1
      %p141 = por %p139, %p140
      %p143 = scmp.ne.s32.totalorder %s126, %s142
      %p144 = scmp.eq.s32.totalorder %s24, 0
      %p145 = por %p143, %p144
      %s146 = ssub.s32 %s18, %s25
      %p147 = scmp.eq.s32.totalorder %s146, 0
      %s149 = sadd.s32 %s148, 1
      %s150 = scalar_select %p147, %s148, %s149
      %p153 = pneg %p147
      %p154 = scmp.eq.s32.totalorder %s18, 1
      %p155 = por %p153, %p154
      %p156 = scmp.ne.s32.totalorder %s148, %s151
      %p157 = scmp.eq.s32.totalorder %s18, 0
      %p158 = por %p156, %p157
      %p159 = scmp.ne.s32.totalorder %s148, %s151
      %p160 = scmp.eq.s32.totalorder %s23, 1
      %p161 = por %p159, %p160
      %p162 = scmp.ne.s32.totalorder %s151, %s152
      %p163 = scmp.eq.s32.totalorder %s23, 0
      %p164 = por %p162, %p163
      %p165 = scmp.ne.s32.totalorder %s151, %s152
      %p166 = scmp.eq.s32.totalorder %s24, 1
      %p167 = por %p165, %p166
      %p169 = scmp.ne.s32.totalorder %s152, %s168
      %p170 = scmp.eq.s32.totalorder %s24, 0
      %p171 = por %p169, %p170
      %p172 = scmp.le.s32.totalorder 1, %s18
      %p173 = scmp.lt.s32.totalorder %s18, 3
      %p174 = pnand %p172, %p173
      %p175 = pneg %p174
      // Predicated region
      $region9: #{tpu_custom_call.1} parent=5 // pred_check
        _
      $region10: #{tpu_custom_call.1} parent=5 // pred_check_branch
        %177 = sbr.rel (%p174) target = $region12
      $region11: #{tpu_custom_call.1} parent=5 // pred_region
        %s178 = ssub.s32 %s18, 1
        // Predicated region
        $region13: #{tpu_custom_call.1} parent=11 // pred_check
          %p179 = pneg %p65
        $region14: #{tpu_custom_call.1} parent=11 // pred_check_branch
          %181 = sbr.rel (%p179) target = $region16
        $region15: #{tpu_custom_call.1} parent=11 // pred_region
          _
        $region16: #{tpu_custom_call.1} parent=11 // pred_fallthru
          _
        // Predicated region
        $region17: #{tpu_custom_call.1} parent=11 // pred_check
          %p182 = pneg %p86
        $region18: #{tpu_custom_call.1} parent=11 // pred_check_branch
          %184 = sbr.rel (%p182) target = $region20
        $region19: #{tpu_custom_call.1} parent=11 // pred_region
          _
        $region20: #{tpu_custom_call.1} parent=11 // pred_fallthru
          _
      $region12: #{tpu_custom_call.1} parent=5 // pred_fallthru
        _
      %p185 = scmp.lt.s32.totalorder %s18, 2
      // Predicated region
      $region21: #{tpu_custom_call.1} parent=5 // pred_check
        %p186 = pneg %p185
      $region22: #{tpu_custom_call.1} parent=5 // pred_check_branch
        %188 = sbr.rel (%p186) target = $region24
      $region23: #{tpu_custom_call.1} parent=5 // pred_region
        // Predicated region
        $region25: #{tpu_custom_call.1} parent=23 // pred_check
          %p189 = pneg %p38
        $region26: #{tpu_custom_call.1} parent=23 // pred_check_branch
          %191 = sbr.rel (%p189) target = $region28
        $region27: #{tpu_custom_call.1} parent=23 // pred_region
          %s192 = smul.u32 16, %s18
          %p193 = scmp.lt.s32.totalorder %s192, 31
          %s194 = scalar_select %p193, %s192, 31
          %s195 = smul.addr %s194, 8
          %s196 = scalar_lea.vmem %s0, %s195
          %s197 = smul.u32 16, %s18
        $region28: #{tpu_custom_call.1} parent=23 // pred_fallthru
          _
      $region24: #{tpu_custom_call.1} parent=5 // pred_fallthru
        _
      %p198 = scmp.le.s32.totalorder 1, %s18
      %p199 = scmp.lt.s32.totalorder %s18, 3
      %p200 = pnand %p198, %p199
      %p201 = pneg %p200
      // Predicated region
      $region29: #{tpu_custom_call.1} parent=5 // pred_check
        _
      $region30: #{tpu_custom_call.1} parent=5 // pred_check_branch
        %203 = sbr.rel (%p200) target = $region32
      $region31: #{tpu_custom_call.1} parent=5 // pred_region
        %s204 = ssub.s32 %s18, 1
        %s205 = smul.u32 16, %s23
        %p206 = scmp.lt.s32.totalorder %s205, 31
        %s207 = scalar_select %p206, %s205, 31
        %s208 = smul.addr %s207, 8
        %s209 = scalar_lea.vmem %s0, %s208
        %p210 = pneg %p44
        %p211 = pneg %p41
        %p212 = pneg %p65
        %p213 = pneg %p62
        %p214 = pneg %p86
        %p215 = pneg %p83
        %p216 = pneg %p112
        %p217 = pneg %p109
        %s218 = sand.u32 %s99, 1
        %s219 = scalar_lea.sflag [#allocation3], %s218
        %s220 = sand.u32 %s99, 1
        %s221 = smul.addr %s220, 128
        %s222 = scalar_lea.vmem [#allocation2], %s221
        %p223 = pneg %p138
        %p224 = pneg %p135
        %s225 = sand.u32 %s23, 1
        %s226 = scalar_lea.sflag [#allocation5], %s225
        %s227 = sand.u32 %s125, 1
        %s228 = smul.addr %s227, 128
        %s229 = scalar_lea.vmem [#allocation4], %s228
        %p230 = pneg %p164
        %p231 = pneg %p161
        %s232 = sand.u32 %s23, 1
        %s233 = scalar_lea.sflag [#allocation5], %s232
        %s234 = sand.u32 %s151, 1
        %s235 = smul.addr %s234, 128
        %s236 = scalar_lea.vmem [#allocation6], %s235
        %s237 = smul.u32 16, %s23
        %p238 = scmp.lt.s32.totalorder %s237, 31
        %s239 = scalar_select %p238, %s237, 31
        %s240 = smul.addr %s239, 8
        %s241 = scalar_lea.vmem %s0, %s240
        %s242 = smul.u32 16, %s23
        %s243 = smul.u32 16, %s23
        %s244 = smul.u32 16, %s23
        %s245 = smul.u32 16, %s23
        %v246 = vld [vmem:[%s241] sm:$0xff]
        %v247 = vld [vmem:[%s241 + $0x8] sm:$0xff]
        %v248 = vld [vmem:[%s241 + $0x10] sm:$0xff]
        %v249 = vld [vmem:[%s241 + $0x18] sm:$0xff]
        %v250 = vld [vmem:[%s241 + $0x20] sm:$0xff]
        %v251 = vld [vmem:[%s241 + $0x28] sm:$0xff]
        %v252 = vld [vmem:[%s241 + $0x30] sm:$0xff]
        %v253 = vld [vmem:[%s241 + $0x38] sm:$0xff]
        %v254 = vld [vmem:[%s241 + $0x40] sm:$0xff]
        %v255 = vld [vmem:[%s241 + $0x48] sm:$0xff]
        %v256 = vld [vmem:[%s241 + $0x50] sm:$0xff]
        %v257 = vld [vmem:[%s241 + $0x58] sm:$0xff]
        %v258 = vld [vmem:[%s241 + $0x60] sm:$0xff]
        %v259 = vld [vmem:[%s241 + $0x68] sm:$0xff]
        %v260 = vld [vmem:[%s241 + $0x70] sm:$0xff]
        %v261 = vld [vmem:[%s241 + $0x78] sm:$0xff]
        %v262 = vld [vmem:[%s1] sm:$0xff]
        %v263 = vld [vmem:[%s1 + $0x8] sm:$0xff]
        %v264 = vld [vmem:[%s1 + $0x10] sm:$0xff]
        %v265 = vld [vmem:[%s1 + $0x18] sm:$0xff]
        %v266 = vld [vmem:[%s2] sm:$0x1]
        %v268 = vlaneseq
        %v269 = vshrl.u32 %v268, 7
        %v270 = vsub.s32 0, %v269
        %v271 = vrot.slane %v266, %v270
        %vm273 = vcmask 261120
        %v275 = vsel %vm273, %v246, 0
        %v278 = vsel %vm273, %v247, 0
        %v281 = vsel %vm273, %v248, 0
        %v284 = vsel %vm273, %v249, 0
        %v287 = vsel %vm273, %v250, 0
        %v290 = vsel %vm273, %v251, 0
        %v293 = vsel %vm273, %v252, 0
        %v296 = vsel %vm273, %v253, 0
        %v299 = vsel %vm273, %v254, 0
        %v302 = vsel %vm273, %v255, 0
        %v305 = vsel %vm273, %v256, 0
        %v308 = vsel %vm273, %v257, 0
        %v311 = vsel %vm273, %v258, 0
        %v314 = vsel %vm273, %v259, 0
        %v317 = vsel %vm273, %v260, 0
        %v320 = vsel %vm273, %v261, 0
        %322 = vmatprep.subr.mxu0 0.0
        %323 = vmatpush1.msra.mxu0 %v262
        %324 = vmatprep.subr.mxu0 0.0
        %325 = vmatpush1.msra.mxu0 %v263
        %326 = vmatprep.subr.mxu0 0.0
        %327 = vmatpush1.msra.mxu0 %v264
        %328 = vmatprep.subr.mxu0 0.0
        %329 = vmatpush1.msra.mxu0 %v265
        %330 = vmatprep.subr.mxu0 0.0
        %331 = vmatpush1.msra.mxu0 0.0
        %332 = vmatprep.subr.mxu0 0.0
        %333 = vmatpush1.msra.mxu0 0.0
        %334 = vmatprep.subr.mxu0 0.0
        %335 = vmatpush1.msra.mxu0 0.0
        %336 = vmatprep.subr.mxu0 0.0
        %337 = vmatpush1.msra.mxu0 0.0
        %338 = vmatprep.subr.mxu0 0.0
        %339 = vmatpush1.msra.mxu0 0.0
        %340 = vmatprep.subr.mxu0 0.0
        %341 = vmatpush1.msra.mxu0 0.0
        %342 = vmatprep.subr.mxu0 0.0
        %343 = vmatpush1.msra.mxu0 0.0
        %344 = vmatprep.subr.mxu0 0.0
        %345 = vmatpush1.msra.mxu0 0.0
        %346 = vmatprep.subr.mxu0 0.0
        %347 = vmatpush1.msra.mxu0 0.0
        %348 = vmatprep.subr.mxu0 0.0
        %349 = vmatpush1.msra.mxu0 0.0
        %350 = vmatprep.subr.mxu0 0.0
        %351 = vmatpush1.msra.mxu0 0.0
        %352 = vmatprep.subr.mxu0 0.0
        %353 = vmatpush1.msra.mxu0 0.0
        %354 = vmatprep.subr.mxu0 0.0
        %355 = vmatpush1.msra.mxu0 0.0
        %356 = vmatprep.subr.mxu0 0.0
        %357 = vmatpush1.msra.mxu0 0.0
        %358 = vmatprep.subr.mxu0 0.0
        %359 = vmatpush1.msra.mxu0 0.0
        %360 = vmatprep.subr.mxu0 0.0
        %361 = vmatpush1.msra.mxu0 0.0
        %362 = vmatprep.subr.mxu0 0.0
        %363 = vmatpush1.msra.mxu0 0.0
        %364 = vmatprep.subr.mxu0 0.0
        %365 = vmatpush1.msra.mxu0 0.0
        %366 = vmatprep.subr.mxu0 0.0
        %367 = vmatpush1.msra.mxu0 0.0
        %368 = vmatprep.subr.mxu0 0.0
        %369 = vmatpush1.msra.mxu0 0.0
        %370 = vmatprep.subr.mxu0 0.0
        %371 = vmatpush1.msra.mxu0 0.0
        %372 = vmatprep.subr.mxu0 0.0
        %373 = vmatpush1.msra.mxu0 0.0
        %374 = vmatprep.subr.mxu0 0.0
        %375 = vmatpush1.msra.mxu0 0.0
        %376 = vmatprep.subr.mxu0 0.0
        %377 = vmatpush1.msra.mxu0 0.0
        %378 = vmatprep.subr.mxu0 0.0
        %379 = vmatpush1.msra.mxu0 0.0
        %380 = vmatprep.subr.mxu0 0.0
        %381 = vmatpush1.msra.mxu0 0.0
        %382 = vmatprep.subr.mxu0 0.0
        %383 = vmatpush1.msra.mxu0 0.0
        %384 = vmatprep.subr.mxu0 0.0
        %385 = vmatpush1.msra.mxu0 0.0
        %386 = vmatprep.mubr.f32.mxu0 0.0
        %387 = vmatmul.mubr.f32.gmra.mrb[0].mxu0 %v275
        %v388 = vpop.f32.mrb[0].mxu0
        %v389 = vadd.f32 %v271, %v388
        %v390 = vpop.f32.mrb[0].mxu0
        %391 = vmatprep.mubr.f32.mxu0 0.0
        %392 = vmatmul.mubr.f32.gmra.mrb[0].mxu0 %v278
        %v393 = vpop.f32.mrb[0].mxu0
        %v394 = vadd.f32 %v271, %v393
        %v395 = vpop.f32.mrb[0].mxu0
        %396 = vmatprep.mubr.f32.mxu0 0.0
        %397 = vmatmul.mubr.f32.gmra.mrb[0].mxu0 %v281
        %v398 = vpop.f32.mrb[0].mxu0
        %v399 = vadd.f32 %v271, %v398
        %v400 = vpop.f32.mrb[0].mxu0
        %401 = vmatprep.mubr.f32.mxu0 0.0
        %402 = vmatmul.mubr.f32.gmra.mrb[0].mxu0 %v284
        %v403 = vpop.f32.mrb[0].mxu0
        %v404 = vadd.f32 %v271, %v403
        %v405 = vpop.f32.mrb[0].mxu0
        %406 = vmatprep.mubr.f32.mxu0 0.0
        %407 = vmatmul.mubr.f32.gmra.mrb[0].mxu0 %v287
        %v408 = vpop.f32.mrb[0].mxu0
        %v409 = vadd.f32 %v271, %v408
        %v410 = vpop.f32.mrb[0].mxu0
        %411 = vmatprep.mubr.f32.mxu0 0.0
        %412 = vmatmul.mubr.f32.gmra.mrb[0].mxu0 %v290
        %v413 = vpop.f32.mrb[0].mxu0
        %v414 = vadd.f32 %v271, %v413
        %v415 = vpop.f32.mrb[0].mxu0
        %416 = vmatprep.mubr.f32.mxu0 0.0
        %417 = vmatmul.mubr.f32.gmra.mrb[0].mxu0 %v293
        %v418 = vpop.f32.mrb[0].mxu0
        %v419 = vadd.f32 %v271, %v418
        %v420 = vpop.f32.mrb[0].mxu0
        %421 = vmatprep.mubr.f32.mxu0 0.0
        %422 = vmatmul.mubr.f32.gmra.mrb[0].mxu0 %v296
        %v423 = vpop.f32.mrb[0].mxu0
        %v424 = vadd.f32 %v271, %v423
        %v425 = vpop.f32.mrb[0].mxu0
        %426 = vmatprep.mubr.f32.mxu0 0.0
        %427 = vmatmul.mubr.f32.gmra.mrb[0].mxu0 %v299
        %v428 = vpop.f32.mrb[0].mxu0
        %v429 = vadd.f32 %v271, %v428
        %v430 = vpop.f32.mrb[0].mxu0
        %431 = vmatprep.mubr.f32.mxu0 0.0
        %432 = vmatmul.mubr.f32.gmra.mrb[0].mxu0 %v302
        %v433 = vpop.f32.mrb[0].mxu0
        %v434 = vadd.f32 %v271, %v433
        %v435 = vpop.f32.mrb[0].mxu0
        %436 = vmatprep.mubr.f32.mxu0 0.0
        %437 = vmatmul.mubr.f32.gmra.mrb[0].mxu0 %v305
        %v438 = vpop.f32.mrb[0].mxu0
        %v439 = vadd.f32 %v271, %v438
        %v440 = vpop.f32.mrb[0].mxu0
        %441 = vmatprep.mubr.f32.mxu0 0.0
        %442 = vmatmul.mubr.f32.gmra.mrb[0].mxu0 %v308
        %v443 = vpop.f32.mrb[0].mxu0
        %v444 = vadd.f32 %v271, %v443
        %v445 = vpop.f32.mrb[0].mxu0
        %446 = vmatprep.mubr.f32.mxu0 0.0
        %447 = vmatmul.mubr.f32.gmra.mrb[0].mxu0 %v311
        %v448 = vpop.f32.mrb[0].mxu0
        %v449 = vadd.f32 %v271, %v448
        %v450 = vpop.f32.mrb[0].mxu0
        %451 = vmatprep.mubr.f32.mxu0 0.0
        %452 = vmatmul.mubr.f32.gmra.mrb[0].mxu0 %v314
        %v453 = vpop.f32.mrb[0].mxu0
        %v454 = vadd.f32 %v271, %v453
        %v455 = vpop.f32.mrb[0].mxu0
        %456 = vmatprep.mubr.f32.mxu0 0.0
        %457 = vmatmul.mubr.f32.gmra.mrb[0].mxu0 %v317
        %v458 = vpop.f32.mrb[0].mxu0
        %v459 = vadd.f32 %v271, %v458
        %v460 = vpop.f32.mrb[0].mxu0
        %461 = vmatprep.mubr.f32.mxu0 0.0
        %462 = vmatmul.mubr.f32.gmra.mrb[0].mxu0 %v320
        %v463 = vpop.f32.mrb[0].mxu0
        %v464 = vadd.f32 %v271, %v463
        %v465 = vpop.f32.mrb[0].mxu0
        %466 = vdwg.mxu0
        %467 = vst [vmem:[%s222] sm:$0xff] %v389
        %468 = vst [vmem:[%s222 + $0x8] sm:$0xff] %v394
        %469 = vst [vmem:[%s222 + $0x10] sm:$0xff] %v399
        %470 = vst [vmem:[%s222 + $0x18] sm:$0xff] %v404
        %471 = vst [vmem:[%s222 + $0x20] sm:$0xff] %v409
        %472 = vst [vmem:[%s222 + $0x28] sm:$0xff] %v414
        %473 = vst [vmem:[%s222 + $0x30] sm:$0xff] %v419
        %474 = vst [vmem:[%s222 + $0x38] sm:$0xff] %v424
        %475 = vst [vmem:[%s222 + $0x40] sm:$0xff] %v429
        %476 = vst [vmem:[%s222 + $0x48] sm:$0xff] %v434
        %477 = vst [vmem:[%s222 + $0x50] sm:$0xff] %v439
        %478 = vst [vmem:[%s222 + $0x58] sm:$0xff] %v444
        %479 = vst [vmem:[%s222 + $0x60] sm:$0xff] %v449
        %480 = vst [vmem:[%s222 + $0x68] sm:$0xff] %v454
        %481 = vst [vmem:[%s222 + $0x70] sm:$0xff] %v459
        %482 = vst [vmem:[%s222 + $0x78] sm:$0xff] %v464
        %483 = vst [vmem:[%s236] sm:$0xff] %v389
        %484 = vst [vmem:[%s236 + $0x8] sm:$0xff] %v394
        %485 = vst [vmem:[%s236 + $0x10] sm:$0xff] %v399
        %486 = vst [vmem:[%s236 + $0x18] sm:$0xff] %v404
        %487 = vst [vmem:[%s236 + $0x20] sm:$0xff] %v409
        %488 = vst [vmem:[%s236 + $0x28] sm:$0xff] %v414
        %489 = vst [vmem:[%s236 + $0x30] sm:$0xff] %v419
        %490 = vst [vmem:[%s236 + $0x38] sm:$0xff] %v424
        %491 = vst [vmem:[%s236 + $0x40] sm:$0xff] %v429
        %492 = vst [vmem:[%s236 + $0x48] sm:$0xff] %v434
        %493 = vst [vmem:[%s236 + $0x50] sm:$0xff] %v439
        %494 = vst [vmem:[%s236 + $0x58] sm:$0xff] %v444
        %495 = vst [vmem:[%s236 + $0x60] sm:$0xff] %v449
        %496 = vst [vmem:[%s236 + $0x68] sm:$0xff] %v454
        %497 = vst [vmem:[%s236 + $0x70] sm:$0xff] %v459
        %498 = vst [vmem:[%s236 + $0x78] sm:$0xff] %v464
        %v499 = vmul.f32 %v389, %v389
        %v500 = vmul.f32 %v394, %v394
        %v501 = vmul.f32 %v399, %v399
        %v502 = vmul.f32 %v404, %v404
        %v503 = vmul.f32 %v409, %v409
        %v504 = vmul.f32 %v414, %v414
        %v505 = vmul.f32 %v419, %v419
        %v506 = vmul.f32 %v424, %v424
        %v507 = vmul.f32 %v429, %v429
        %v508 = vmul.f32 %v434, %v434
        %v509 = vmul.f32 %v439, %v439
        %v510 = vmul.f32 %v444, %v444
        %v511 = vmul.f32 %v449, %v449
        %v512 = vmul.f32 %v454, %v454
        %v513 = vmul.f32 %v459, %v459
        %v514 = vmul.f32 %v464, %v464
        %515 = vadd.xlane.f32.xlu0 %v499
        %v516 = vpop.xlane.xlu0 %515
        %517 = vadd.xlane.f32.xlu0 %v500
        %v518 = vpop.xlane.xlu0 %517
        %519 = vadd.xlane.f32.xlu0 %v501
        %v520 = vpop.xlane.xlu0 %519
        %521 = vadd.xlane.f32.xlu0 %v502
        %v522 = vpop.xlane.xlu0 %521
        %523 = vadd.xlane.f32.xlu0 %v503
        %v524 = vpop.xlane.xlu0 %523
        %525 = vadd.xlane.f32.xlu0 %v504
        %v526 = vpop.xlane.xlu0 %525
        %527 = vadd.xlane.f32.xlu0 %v505
        %v528 = vpop.xlane.xlu0 %527
        %529 = vadd.xlane.f32.xlu0 %v506
        %v530 = vpop.xlane.xlu0 %529
        %531 = vadd.xlane.f32.xlu0 %v507
        %v532 = vpop.xlane.xlu0 %531
        %533 = vadd.xlane.f32.xlu0 %v508
        %v534 = vpop.xlane.xlu0 %533
        %535 = vadd.xlane.f32.xlu0 %v509
        %v536 = vpop.xlane.xlu0 %535
        %537 = vadd.xlane.f32.xlu0 %v510
        %v538 = vpop.xlane.xlu0 %537
        %539 = vadd.xlane.f32.xlu0 %v511
        %v540 = vpop.xlane.xlu0 %539
        %541 = vadd.xlane.f32.xlu0 %v512
        %v542 = vpop.xlane.xlu0 %541
        %543 = vadd.xlane.f32.xlu0 %v513
        %v544 = vpop.xlane.xlu0 %543
        %545 = vadd.xlane.f32.xlu0 %v514
        %v546 = vpop.xlane.xlu0 %545
        %v547 = vmax.f32 %v516, 1e-16
        %v548 = vmax.f32 %v518, 1e-16
        %v549 = vmax.f32 %v520, 1e-16
        %v550 = vmax.f32 %v522, 1e-16
        %v551 = vmax.f32 %v524, 1e-16
        %v552 = vmax.f32 %v526, 1e-16
        %v553 = vmax.f32 %v528, 1e-16
        %v554 = vmax.f32 %v530, 1e-16
        %v555 = vmax.f32 %v532, 1e-16
        %v556 = vmax.f32 %v534, 1e-16
        %v557 = vmax.f32 %v536, 1e-16
        %v558 = vmax.f32 %v538, 1e-16
        %v559 = vmax.f32 %v540, 1e-16
        %v560 = vmax.f32 %v542, 1e-16
        %v561 = vmax.f32 %v544, 1e-16
        %v562 = vmax.f32 %v546, 1e-16
        %v563 = vrsqrt.pop %v547
        %v564 = vrsqrt.pop %v548
        %v565 = vrsqrt.pop %v549
        %v566 = vrsqrt.pop %v550
        %v567 = vrsqrt.pop %v551
        %v568 = vrsqrt.pop %v552
        %v569 = vrsqrt.pop %v553
        %v570 = vrsqrt.pop %v554
        %v571 = vrsqrt.pop %v555
        %v572 = vrsqrt.pop %v556
        %v573 = vrsqrt.pop %v557
        %v574 = vrsqrt.pop %v558
        %v575 = vrsqrt.pop %v559
        %v576 = vrsqrt.pop %v560
        %v577 = vrsqrt.pop %v561
        %v578 = vrsqrt.pop %v562
        %v579 = vmul.f32 %v389, %v563
        %v580 = vmul.f32 %v394, %v564
        %v581 = vmul.f32 %v399, %v565
        %v582 = vmul.f32 %v404, %v566
        %v583 = vmul.f32 %v409, %v567
        %v584 = vmul.f32 %v414, %v568
        %v585 = vmul.f32 %v419, %v569
        %v586 = vmul.f32 %v424, %v570
        %v587 = vmul.f32 %v429, %v571
        %v588 = vmul.f32 %v434, %v572
        %v589 = vmul.f32 %v439, %v573
        %v590 = vmul.f32 %v444, %v574
        %v591 = vmul.f32 %v449, %v575
        %v592 = vmul.f32 %v454, %v576
        %v593 = vmul.f32 %v459, %v577
        %v594 = vmul.f32 %v464, %v578
        %595 = vst [vmem:[%s229] sm:$0xff] %v579
        %596 = vst [vmem:[%s229 + $0x8] sm:$0xff] %v580
        %597 = vst [vmem:[%s229 + $0x10] sm:$0xff] %v581
        %598 = vst [vmem:[%s229 + $0x18] sm:$0xff] %v582
        %599 = vst [vmem:[%s229 + $0x20] sm:$0xff] %v583
        %600 = vst [vmem:[%s229 + $0x28] sm:$0xff] %v584
        %601 = vst [vmem:[%s229 + $0x30] sm:$0xff] %v585
        %602 = vst [vmem:[%s229 + $0x38] sm:$0xff] %v586
        %603 = vst [vmem:[%s229 + $0x40] sm:$0xff] %v587
        %604 = vst [vmem:[%s229 + $0x48] sm:$0xff] %v588
        %605 = vst [vmem:[%s229 + $0x50] sm:$0xff] %v589
        %606 = vst [vmem:[%s229 + $0x58] sm:$0xff] %v590
        %607 = vst [vmem:[%s229 + $0x60] sm:$0xff] %v591
        %608 = vst [vmem:[%s229 + $0x68] sm:$0xff] %v592
        %609 = vst [vmem:[%s229 + $0x70] sm:$0xff] %v593
        %610 = vst [vmem:[%s229 + $0x78] sm:$0xff] %v594
        %s611 = sand.u32 %s99, 1
        %s612 = scalar_lea.sflag [#allocation3], %s611
        %s613 = sand.u32 %s99, 1
        %s614 = smul.addr %s613, 128
        %s615 = scalar_lea.vmem [#allocation2], %s614
        %s616 = sand.u32 %s23, 1
        %s617 = scalar_lea.sflag [#allocation5], %s616
        %s618 = sand.u32 %s125, 1
        %s619 = smul.addr %s618, 128
        %s620 = scalar_lea.vmem [#allocation4], %s619
        %s621 = sand.u32 %s23, 1
        %s622 = scalar_lea.sflag [#allocation5], %s621
        %s623 = sand.u32 %s151, 1
        %s624 = smul.addr %s623, 128
        %s625 = scalar_lea.vmem [#allocation6], %s624
        // Predicated region
        $region33: #{tpu_custom_call.1} parent=31 // pred_check
          %p626 = pneg %p109
        $region34: #{tpu_custom_call.1} parent=31 // pred_check_branch
          %628 = sbr.rel (%p626) target = $region36
        $region35: #{tpu_custom_call.1} parent=31 // pred_region
          %s629 = smul.u32 16, %s23
          %s631 = ssub.s32 2048, 2048
          %632 = vsyncadd %s612, %s631
          %s633 = smul.addr %s629, 128
          %s634 = scalar_lea.hbm %s3, %s633
          %s635 = sshll.u32 %s615, 4
          %s636 = int_to_ptr.vmem [resolvable:$true] %s635
          %641 = dma.vmem_to_hbm [thread:$0]  %s636, 2048, %s634, %s612, 128, 128, 8
        $region36: #{tpu_custom_call.1} parent=31 // pred_fallthru
          _
        // Predicated region
        $region37: #{tpu_custom_call.1} parent=31 // pred_check
          %p642 = pneg %p135
        $region38: #{tpu_custom_call.1} parent=31 // pred_check_branch
          %644 = sbr.rel (%p642) target = $region40
        $region39: #{tpu_custom_call.1} parent=31 // pred_region
          %s645 = smul.u32 16, %s23
          %s647 = ssub.s32 2048, 2048
          %648 = vsyncadd %s617, %s647
          %s649 = smul.addr %s645, 128
          %s650 = scalar_lea.hbm %s4, %s649
          %s651 = sshll.u32 %s620, 4
          %s652 = int_to_ptr.vmem [resolvable:$true] %s651
          %657 = dma.vmem_to_hbm [thread:$0]  %s652, 2048, %s650, %s617, 128, 128, 8
        $region40: #{tpu_custom_call.1} parent=31 // pred_fallthru
          _
        // Predicated region
        $region41: #{tpu_custom_call.1} parent=31 // pred_check
          %p658 = pneg %p161
        $region42: #{tpu_custom_call.1} parent=31 // pred_check_branch
          %660 = sbr.rel (%p658) target = $region44
        $region43: #{tpu_custom_call.1} parent=31 // pred_region
          %s661 = smul.u32 16, %s23
          %s663 = ssub.s32 2048, 2048
          %664 = vsyncadd %s622, %s663
          %s665 = smul.addr %s661, 128
          %s666 = scalar_lea.hbm %s5, %s665
          %s667 = sshll.u32 %s625, 4
          %s668 = int_to_ptr.vmem [resolvable:$true] %s667
          %673 = dma.vmem_to_hbm [thread:$0]  %s668, 2048, %s666, %s622, 128, 128, 8
        $region44: #{tpu_custom_call.1} parent=31 // pred_fallthru
          _
      $region32: #{tpu_custom_call.1} parent=5 // pred_fallthru
        _
      %p674 = scmp.le.s32.totalorder 2, %s18
      // Predicated region
      $region45: #{tpu_custom_call.1} parent=5 // pred_check
        %p675 = pneg %p674
      $region46: #{tpu_custom_call.1} parent=5 // pred_check_branch
        %677 = sbr.rel (%p675) target = $region48
      $region47: #{tpu_custom_call.1} parent=5 // pred_region
        %s678 = ssub.s32 %s18, 2
        // Predicated region
        $region49: #{tpu_custom_call.1} parent=47 // pred_check
          %p679 = pneg %p115
        $region50: #{tpu_custom_call.1} parent=47 // pred_check_branch
          %681 = sbr.rel (%p679) target = $region52
        $region51: #{tpu_custom_call.1} parent=47 // pred_region
          %s682 = sand.u32 %s100, 1
          %s683 = scalar_lea.sflag [#allocation3], %s682
          %s684 = sand.u32 %s100, 1
          %s685 = smul.addr %s684, 128
          %s686 = scalar_lea.vmem [#allocation2], %s685
          %687 = dma.done %s683, 2048
        $region52: #{tpu_custom_call.1} parent=47 // pred_fallthru
          _
        // Predicated region
        $region53: #{tpu_custom_call.1} parent=47 // pred_check
          %p688 = pneg %p141
        $region54: #{tpu_custom_call.1} parent=47 // pred_check_branch
          %690 = sbr.rel (%p688) target = $region56
        $region55: #{tpu_custom_call.1} parent=47 // pred_region
          %s691 = sand.u32 %s24, 1
          %s692 = scalar_lea.sflag [#allocation5], %s691
          %s693 = sand.u32 %s126, 1
          %s694 = smul.addr %s693, 128
          %s695 = scalar_lea.vmem [#allocation4], %s694
          %696 = dma.done %s692, 2048
        $region56: #{tpu_custom_call.1} parent=47 // pred_fallthru
          _
        // Predicated region
        $region57: #{tpu_custom_call.1} parent=47 // pred_check
          %p697 = pneg %p167
        $region58: #{tpu_custom_call.1} parent=47 // pred_check_branch
          %699 = sbr.rel (%p697) target = $region60
        $region59: #{tpu_custom_call.1} parent=47 // pred_region
          %s700 = sand.u32 %s24, 1
          %s701 = scalar_lea.sflag [#allocation5], %s700
          %s702 = sand.u32 %s152, 1
          %s703 = smul.addr %s702, 128
          %s704 = scalar_lea.vmem [#allocation6], %s703
          %705 = dma.done %s701, 2048
        $region60: #{tpu_custom_call.1} parent=47 // pred_fallthru
          _
      $region48: #{tpu_custom_call.1} parent=5 // pred_fallthru
        _
    $region6: #{tpu_custom_call.1} parent=1 // loop_footer
      %s22 = sadd.s32 1, %s18
    $region7: #{tpu_custom_call.1} parent=1 // loop_footer_branch
      %17 = sbr.rel target = $region3
    $region8: #{tpu_custom_call.1} parent=1 // loop_exit
      _
    %706 = vsyncpa [#allocation3], 1
    %s707 = scalar_lea.sflag [#allocation3], 1
    %708 = vsyncpa %s707, 1
    %709 = vsyncpa [#allocation5], 1
    %s710 = scalar_lea.sflag [#allocation5], 1
    %711 = vsyncpa %s710, 1

</llo_original>
